<compile_context>
chip_gen: v5e
topology: v5e:2x2
jax: 0.10.0
libtpu: 0.0.40
codegen_flags: <defaults>
</compile_context>

<pallas_src>
import functools
import math

import jax
import jax.numpy as jnp
import numpy as np
from jax.experimental import pallas as pl
from jax.experimental.pallas import tpu as pltpu

_LANE = 128        # TPU lane width; feature dims padded to this for lane-dense stores
_NEG_FILL = -1e30  # "-inf" fill for the logcumsumexp identity (safe in f32)


# ----------------------------- in-kernel math helpers -----------------------------
def _softplus(x):
    # Stable softplus: max(x, 0) + log(1 + exp(-|x|)); never overflows.
    return jnp.maximum(x, 0.0) + jnp.log(1.0 + jnp.exp(-jnp.abs(x)))


def _log_hidden_activation(x):
    # LogHiddenActivation: where(x >= 0, log(x + 0.5), -softplus(-x)).
    # max() guards the unselected branch against log of a negative number.
    return jnp.where(x >= 0.0, jnp.log(jnp.maximum(x, 0.0) + 0.5), -_softplus(-x))


def _logaddexp(a, b):
    # max(a,b) + log(1 + exp(-|a-b|)); safe with the -1e30 fill rows.
    return jnp.maximum(a, b) + jnp.log(1.0 + jnp.exp(-jnp.abs(a - b)))


# ----------------------------------- kernel -----------------------------------
def minimal_gru_kernel(x_ref, w1_ref, b1_ref, w2_ref, b2_ref, w3_ref, b3_ref,
                       wo1_ref, bo1_ref, wo2_ref, bo2_ref,
                       out_ref, hid_ref, *, bblk, seq_len, hidden_pad):
    L = seq_len
    Hp = hidden_pad
    rows = bblk * L
    din = x_ref.shape[-1]

    # ---- position-independent MLP: fold batch*seq into the GEMM M dimension ----
    x2 = x_ref[...].reshape(rows, din)
    h1 = jnp.maximum(
        jnp.dot(x2, w1_ref[...], preferred_element_type=jnp.float32) + b1_ref[...], 0.0)
    h2 = jnp.maximum(
        jnp.dot(h1.astype(w2_ref.dtype), w2_ref[...],
                preferred_element_type=jnp.float32) + b2_ref[...], 0.0)
    # Fused k / h_tilde projection: one N = 2*Hp GEMM; the split below is
    # lane-aligned because each half is padded to Hp (a multiple of 128).
    lat = jnp.dot(h2.astype(w3_ref.dtype), w3_ref[...],
                  preferred_element_type=jnp.float32) + b3_ref[...]
    k = lat[:, :Hp]
    h_tilde = lat[:, Hp:]

    # ---- log-space gate math (f32 on VPU/EUP) ----
    log_z = -_softplus(-k)                        # log(sigmoid(k))
    log_coeffs = -jnp.log(1.0 + jnp.exp(log_z))   # -softplus(log_z); log_z <= 0 so exact
    log_tilde = _log_hidden_activation(h_tilde)

    # ---- parallel scans in log space over the sequence ----
    # Rows are batch-major / sequence-minor, so a sublane roll by d moves row t to
    # row t+d inside every batch block; rows whose in-sequence index < d receive
    # the scan identity via a select.  roll uses the XLU slot, the select the VPU
    # slot — no per-step pad/concat materialization.  The mask iota is hoisted.
    seq_idx = jax.lax.broadcasted_iota(jnp.int32, (bblk, L, Hp), 1).reshape(rows, Hp)

    a = log_coeffs                                # inclusive cumsum(log_coeffs)
    d = 1
    while d < L:
        a = a + jnp.where(seq_idx >= d, pltpu.roll(a, shift=d, axis=0), 0.0)
        d *= 2

    s = (log_z + log_tilde) - a                   # inclusive logcumsumexp
    d = 1
    while d < L:
        s = _logaddexp(s, jnp.where(seq_idx >= d,
                                    pltpu.roll(s, shift=d, axis=0), _NEG_FILL))
        d *= 2
    # NOTE: for long L a work-efficient (chunked/Blelloch) logcumsumexp and
    # lane-packing when H << 128 would further cut EUP work; not needed here.

    log_h0 = jnp.float32(np.log(0.5))             # LogHiddenActivation(h_0 = 0)
    h_seq = jnp.exp(a + _logaddexp(log_h0, s))    # (rows, Hp), f32

    # ---- output MLP ----
    o1 = jnp.maximum(
        jnp.dot(h_seq.astype(wo1_ref.dtype), wo1_ref[...],
                preferred_element_type=jnp.float32) + bo1_ref[...], 0.0)
    out = jnp.dot(o1.astype(wo2_ref.dtype), wo2_ref[...],
                  preferred_element_type=jnp.float32) + bo2_ref[...]

    # ---- lane-dense stores (Hp, Dp are multiples of 128) ----
    hid_ref[...] = h_seq.reshape(bblk, L, Hp).astype(hid_ref.dtype)
    out_ref[...] = out.reshape(bblk, L, out.shape[-1]).astype(out_ref.dtype)


# ----------------------------------- wrapper -----------------------------------
def _round_up(v, m):
    return ((v + m - 1) // m) * m


def _choose_bblk(B, L, Hp, Dp, Din, weight_bytes):
    # Size the per-block working set for v7x's 64 MiB physical VMEM (the binding
    # generation): resident weights + ~10 live (bblk*L, Hp/2Hp) f32 intermediates
    # + double-buffered x/out/hid pipeline blocks must stay under ~40 MiB.
    budget = 40 * 1024 * 1024 - weight_bytes
    budget = max(budget, 4 * 1024 * 1024)
    per_row_bytes = (10 * Hp + 2 * Hp + 2 * (Dp + Hp) + 2 * Din) * 4
    bblk = max(1, budget // (per_row_bytes * L))
    if bblk < B:
        # Keep bblk*L a multiple of 128 so the flattened GEMM M-dim fills MXU rows
        # and the sublane-merging reshapes stay tile aligned.
        step = 128 // math.gcd(128, L)
        bblk = max(step, (bblk // step) * step)
    return int(min(bblk, B))


def minimal_gru_forward(x, params, *, matmul_dtype=jnp.bfloat16,
                        hidden_dtype=jnp.float32, bblk=None,
                        vmem_limit_bytes=48 * 1024 * 1024):
    """MinimalGRU forward.  x: (B, L, Din).  Returns (out (B,L,Dout), hidden (B,L,H)).

    matmul_dtype: MXU input dtype (bf16 default, f32 accumulation); log-space
    elementwise math stays f32 either way.  hidden_dtype=bf16 halves the hidden
    writeback (useful on v5e's lower HBM bandwidth).
    """
    B, L, Din = x.shape
    H = params["w2"].shape[0]
    Dout = params["wo2"].shape[1]
    Hp = _round_up(H, _LANE)
    Dp = _round_up(Dout, _LANE)
    wd = jnp.dtype(matmul_dtype)

    def pad2(a, r, c):
        return jnp.pad(a, ((0, r - a.shape[0]), (0, c - a.shape[1])))

    # Fused gate projection: k half in lanes [0, Hp), h_tilde half in [Hp, 2Hp).
    w3k, w3h = params["w3"][:, :H], params["w3"][:, H:]
    b3k, b3h = params["b3"][:, :H], params["b3"][:, H:]

    w1 = pad2(params["w1"], Din, Hp).astype(wd)
    w2 = pad2(params["w2"], Hp, Hp).astype(wd)
    w3 = jnp.concatenate([pad2(w3k, Hp, Hp), pad2(w3h, Hp, Hp)], axis=1).astype(wd)
    wo1 = pad2(params["wo1"], Hp, Hp).astype(wd)
    wo2 = pad2(params["wo2"], Hp, Dp).astype(wd)
    b1 = pad2(params["b1"], 1, Hp)                       # biases stay f32
    b2 = pad2(params["b2"], 1, Hp)
    b3 = jnp.concatenate([pad2(b3k, 1, Hp), pad2(b3h, 1, Hp)], axis=1)
    bo1 = pad2(params["bo1"], 1, Hp)
    bo2 = pad2(params["bo2"], 1, Dp)

    weights = (w1, b1, w2, b2, w3, b3, wo1, bo1, wo2, bo2)
    weight_bytes = sum(int(np.prod(w.shape)) * w.dtype.itemsize for w in weights)

    if bblk is None:
        bblk = _choose_bblk(B, L, Hp, Dp, Din, weight_bytes)
    bblk = max(1, min(int(bblk), B))
    nb = pl.cdiv(B, bblk)
    Bp = nb * bblk

    xw = x.astype(wd)
    if Bp != B:
        xw = jnp.pad(xw, ((0, Bp - B), (0, 0), (0, 0)))

    kernel = functools.partial(minimal_gru_kernel, bblk=bblk, seq_len=L, hidden_pad=Hp)

    # Weights: whole-array resident VMEM (one DMA, no per-step traffic).
    resident = pl.BlockSpec(memory_space=pltpu.MemorySpace.VMEM)
    # Activations: batch-blocked, pipelined (double-buffered) over the grid.
    grid_spec = pltpu.PrefetchScalarGridSpec(
        num_scalar_prefetch=0,
        grid=(nb,),
        in_specs=[pl.BlockSpec((bblk, L, Din), lambda i: (i, 0, 0))] + [resident] * 10,
        out_specs=(pl.BlockSpec((bblk, L, Dp), lambda i: (i, 0, 0)),
                   pl.BlockSpec((bblk, L, Hp), lambda i: (i, 0, 0))),
    )

    out_p, hid_p = pl.pallas_call(
        kernel,
        out_shape=(jax.ShapeDtypeStruct((Bp, L, Dp), jnp.float32),
                   jax.ShapeDtypeStruct((Bp, L, Hp), jnp.dtype(hidden_dtype))),
        grid_spec=grid_spec,
        compiler_params=pltpu.CompilerParams(
            dimension_semantics=("parallel",),
            vmem_limit_bytes=int(vmem_limit_bytes)),
    )(xw, *weights)

    # Strip batch and lane padding outside the kernel.
    return out_p[:B, :, :Dout], hid_p[:B, :, :H]


# ------------------------------- pure-JAX reference -------------------------------
def _reference_forward(x, params):
    def softplus(v):
        return jnp.logaddexp(v, 0.0)

    def log_act(v):
        return jnp.where(v >= 0.0, jnp.log(v + 0.5), -softplus(-v))

    h1 = jax.nn.relu(x @ params["w1"] + params["b1"])
    h2 = jax.nn.relu(h1 @ params["w2"] + params["b2"])
    latent = h2 @ params["w3"] + params["b3"]
    H = params["w2"].shape[0]
    k, h_tilde = latent[..., :H], latent[..., H:]

    log_z = -softplus(-k)
    log_coeffs = -softplus(log_z)
    h_tilde = log_act(h_tilde)
    h_0 = jnp.zeros((x.shape[0], 1, H), dtype=x.dtype)
    log_values = jnp.concatenate([log_act(h_0), log_z + h_tilde], axis=1)

    a_star = jnp.pad(jnp.cumsum(log_coeffs, axis=1), ((0, 0), (1, 0), (0, 0)))
    diff = jnp.moveaxis(log_values - a_star, 1, 0)

    def step(carry, xt):
        new = jnp.logaddexp(carry, xt)
        return new, new

    init = jnp.full(diff.shape[1:], -jnp.inf, dtype=diff.dtype)
    _, lcse = jax.lax.scan(step, init, diff)
    lcse = jnp.moveaxis(lcse, 0, 1)
    h = jnp.exp((a_star + lcse)[:, 1:])

    o1 = jax.nn.relu(h @ params["wo1"] + params["bo1"])
    out = o1 @ params["wo2"] + params["bo2"]
    return out, h


# ------------------------------- param init (deterministic) -------------------------------
def init_params(key, input_dim, hidden_dim, output_dim):
    def linear(k, fan_in, fan_out):
        bound = 1.0 / np.sqrt(fan_in)
        kw, kb = jax.random.split(k)
        w = jax.random.uniform(kw, (fan_in, fan_out), jnp.float32, -bound, bound)
        b = jax.random.uniform(kb, (1, fan_out), jnp.float32, -bound, bound)
        return w, b

    keys = jax.random.split(key, 5)
    w1, b1 = linear(keys[0], input_dim, hidden_dim)
    w2, b2 = linear(keys[1], hidden_dim, hidden_dim)
    w3, b3 = linear(keys[2], hidden_dim, 2 * hidden_dim)
    wo1, bo1 = linear(keys[3], hidden_dim, hidden_dim)
    wo2, bo2 = linear(keys[4], hidden_dim, output_dim)
    return dict(w1=w1, b1=b1, w2=w2, b2=b2, w3=w3, b3=b3,
                wo1=wo1, bo1=bo1, wo2=wo2, bo2=bo2)


if __name__ == "__main__":
    B, L, DIN, H, DOUT = 2, 8, 16, 32, 8

    key = jax.random.PRNGKey(0)
    kx, kp = jax.random.split(key)
    x = jax.random.normal(kx, (B, L, DIN), dtype=jnp.float32)
    params = init_params(kp, DIN, H, DOUT)

    ref_out, ref_hid = _reference_forward(x, params)

    # 1) f32 MXU path — tight tolerance against the f32 reference.
    out32, hid32 = minimal_gru_forward(x, params, matmul_dtype=jnp.float32)
    out32 = jax.block_until_ready(out32)
    hid32 = jax.block_until_ready(hid32)
    np.testing.assert_allclose(np.asarray(hid32), np.asarray(ref_hid), rtol=2e-3, atol=2e-3)
    np.testing.assert_allclose(np.asarray(out32), np.asarray(ref_out), rtol=2e-3, atol=2e-3)

    # 2) default bf16 MXU path (f32 accumulation / f32 log-space math) — looser tolerance.
    out_bf, hid_bf = minimal_gru_forward(x, params)
    out_bf = jax.block_until_ready(out_bf)
    hid_bf = jax.block_until_ready(hid_bf)
    np.testing.assert_allclose(np.asarray(hid_bf), np.asarray(ref_hid), rtol=1e-1, atol=5e-2)
    np.testing.assert_allclose(np.asarray(out_bf), np.asarray(ref_out), rtol=1e-1, atol=5e-2)

    # 3) multi-block grid + batch-padding path (B=5 forced into blocks of 2).
    x5 = jax.random.normal(jax.random.PRNGKey(1), (5, L, DIN), dtype=jnp.float32)
    ref_out5, ref_hid5 = _reference_forward(x5, params)
    out5, hid5 = minimal_gru_forward(x5, params, matmul_dtype=jnp.float32, bblk=2)
    out5 = jax.block_until_ready(out5)
    hid5 = jax.block_until_ready(hid5)
    np.testing.assert_allclose(np.asarray(hid5), np.asarray(ref_hid5), rtol=2e-3, atol=2e-3)
    np.testing.assert_allclose(np.asarray(out5), np.asarray(ref_out5), rtol=2e-3, atol=2e-3)

    assert out_bf.shape == (B, L, DOUT) and hid_bf.shape == (B, L, H)
    print("KERNEL_OK")
</pallas_src>

<mosaic_0001>
module attributes {stable_mosaic.version = 11 : i64} {
  func.func @minimal_gru_kernel(%arg0: i32, %arg1: memref<2x8x16xf32, #tpu.memory_space<vmem>>, %arg2: memref<16x128xf32, #tpu.memory_space<vmem>>, %arg3: memref<1x128xf32, #tpu.memory_space<vmem>>, %arg4: memref<128x128xf32, #tpu.memory_space<vmem>>, %arg5: memref<1x128xf32, #tpu.memory_space<vmem>>, %arg6: memref<128x256xf32, #tpu.memory_space<vmem>>, %arg7: memref<1x256xf32, #tpu.memory_space<vmem>>, %arg8: memref<128x128xf32, #tpu.memory_space<vmem>>, %arg9: memref<1x128xf32, #tpu.memory_space<vmem>>, %arg10: memref<128x128xf32, #tpu.memory_space<vmem>>, %arg11: memref<1x128xf32, #tpu.memory_space<vmem>>, %arg12: memref<2x8x128xf32, #tpu.memory_space<vmem>>, %arg13: memref<2x8x128xf32, #tpu.memory_space<vmem>>) attributes {dimension_semantics = [#tpu.dimension_semantics<parallel>], iteration_bounds = array<i64: 1>, scalar_prefetch = 0 : i64, scratch_operands = 0 : i64, tpu.core_type = #tpu.core_type<tc>, window_params = [{transform_indices = @transform_0, window_bounds = array<i64: 2, 8, 16>}, {pipeline_mode = #tpu.pipeline_mode<synchronous>, transform_indices = @transform_1, window_bounds = array<i64: 16, 128>}, {pipeline_mode = #tpu.pipeline_mode<synchronous>, transform_indices = @transform_2, window_bounds = array<i64: 1, 128>}, {pipeline_mode = #tpu.pipeline_mode<synchronous>, transform_indices = @transform_3, window_bounds = array<i64: 128, 128>}, {pipeline_mode = #tpu.pipeline_mode<synchronous>, transform_indices = @transform_4, window_bounds = array<i64: 1, 128>}, {pipeline_mode = #tpu.pipeline_mode<synchronous>, transform_indices = @transform_5, window_bounds = array<i64: 128, 256>}, {pipeline_mode = #tpu.pipeline_mode<synchronous>, transform_indices = @transform_6, window_bounds = array<i64: 1, 256>}, {pipeline_mode = #tpu.pipeline_mode<synchronous>, transform_indices = @transform_7, window_bounds = array<i64: 128, 128>}, {pipeline_mode = #tpu.pipeline_mode<synchronous>, transform_indices = @transform_8, window_bounds = array<i64: 1, 128>}, {pipeline_mode = #tpu.pipeline_mode<synchronous>, transform_indices = @transform_9, window_bounds = array<i64: 128, 128>}, {pipeline_mode = #tpu.pipeline_mode<synchronous>, transform_indices = @transform_10, window_bounds = array<i64: 1, 128>}, {transform_indices = @transform_11, window_bounds = array<i64: 2, 8, 128>}, {transform_indices = @transform_12, window_bounds = array<i64: 2, 8, 128>}]} {
    %c0 = arith.constant 0 : index
    %c0_0 = arith.constant 0 : index
    %c0_1 = arith.constant 0 : index
    %0 = vector.load %arg1[%c0, %c0_0, %c0_1] : memref<2x8x16xf32, #tpu.memory_space<vmem>>, vector<2x8x16xf32>
    %1 = vector.shape_cast %0 : vector<2x8x16xf32> to vector<16x16xf32>
    %c0_2 = arith.constant 0 : index
    %c0_3 = arith.constant 0 : index
    %2 = vector.load %arg2[%c0_2, %c0_3] : memref<16x128xf32, #tpu.memory_space<vmem>>, vector<16x128xf32>
    %cst = arith.constant dense<0.000000e+00> : vector<16x128xf32>
    %3 = tpu.matmul %1, %2, %cst {dimension_numbers = #tpu.dot_dimension_numbers<[1], [0], [0], [1], [0, 0, 1, 1], [], []>} : vector<16x16xf32>, vector<16x128xf32>, vector<16x128xf32> -> vector<16x128xf32>
    %c0_4 = arith.constant 0 : index
    %c0_5 = arith.constant 0 : index
    %4 = vector.load %arg3[%c0_4, %c0_5] : memref<1x128xf32, #tpu.memory_space<vmem>>, vector<1x128xf32>
    %5 = vector.broadcast %4 : vector<1x128xf32> to vector<16x128xf32>
    %6 = arith.addf %3, %5 : vector<16x128xf32>
    %cst_6 = arith.constant 0.000000e+00 : f32
    %7 = vector.broadcast %cst_6 : f32 to vector<16x128xf32>
    %8 = arith.maximumf %6, %7 : vector<16x128xf32>
    %c0_7 = arith.constant 0 : index
    %c0_8 = arith.constant 0 : index
    %9 = vector.load %arg4[%c0_7, %c0_8] : memref<128x128xf32, #tpu.memory_space<vmem>>, vector<128x128xf32>
    %cst_9 = arith.constant dense<0.000000e+00> : vector<16x128xf32>
    %10 = tpu.matmul %8, %9, %cst_9 {dimension_numbers = #tpu.dot_dimension_numbers<[1], [0], [0], [1], [0, 0, 1, 1], [], []>} : vector<16x128xf32>, vector<128x128xf32>, vector<16x128xf32> -> vector<16x128xf32>
    %c0_10 = arith.constant 0 : index
    %c0_11 = arith.constant 0 : index
    %11 = vector.load %arg5[%c0_10, %c0_11] : memref<1x128xf32, #tpu.memory_space<vmem>>, vector<1x128xf32>
    %12 = vector.broadcast %11 : vector<1x128xf32> to vector<16x128xf32>
    %13 = arith.addf %10, %12 : vector<16x128xf32>
    %cst_12 = arith.constant 0.000000e+00 : f32
    %14 = vector.broadcast %cst_12 : f32 to vector<16x128xf32>
    %15 = arith.maximumf %13, %14 : vector<16x128xf32>
    %c0_13 = arith.constant 0 : index
    %c0_14 = arith.constant 0 : index
    %16 = vector.load %arg6[%c0_13, %c0_14] : memref<128x256xf32, #tpu.memory_space<vmem>>, vector<128x256xf32>
    %cst_15 = arith.constant dense<0.000000e+00> : vector<16x256xf32>
    %17 = tpu.matmul %15, %16, %cst_15 {dimension_numbers = #tpu.dot_dimension_numbers<[1], [0], [0], [1], [0, 0, 1, 1], [], []>} : vector<16x128xf32>, vector<128x256xf32>, vector<16x256xf32> -> vector<16x256xf32>
    %c0_16 = arith.constant 0 : index
    %c0_17 = arith.constant 0 : index
    %18 = vector.load %arg7[%c0_16, %c0_17] : memref<1x256xf32, #tpu.memory_space<vmem>>, vector<1x256xf32>
    %19 = vector.broadcast %18 : vector<1x256xf32> to vector<16x256xf32>
    %20 = arith.addf %17, %19 : vector<16x256xf32>
    %21 = vector.extract_strided_slice %20 {offsets = [0, 0], sizes = [16, 128], strides = [1, 1]} : vector<16x256xf32> to vector<16x128xf32>
    %22 = vector.extract_strided_slice %20 {offsets = [0, 128], sizes = [16, 128], strides = [1, 1]} : vector<16x256xf32> to vector<16x128xf32>
    %cst_18 = arith.constant 0.000000e+00 : f32
    %23 = vector.broadcast %cst_18 : f32 to vector<16x128xf32>
    %24 = arith.subf %23, %21 : vector<16x128xf32>
    %cst_19 = arith.constant 0.000000e+00 : f32
    %25 = vector.broadcast %cst_19 : f32 to vector<16x128xf32>
    %26 = arith.maximumf %24, %25 : vector<16x128xf32>
    %27 = math.absf %24 : vector<16x128xf32>
    %cst_20 = arith.constant 0.000000e+00 : f32
    %28 = vector.broadcast %cst_20 : f32 to vector<16x128xf32>
    %29 = arith.subf %28, %27 : vector<16x128xf32>
    %30 = math.exp %29 : vector<16x128xf32>
    %cst_21 = arith.constant 1.000000e+00 : f32
    %31 = vector.broadcast %cst_21 : f32 to vector<16x128xf32>
    %32 = arith.addf %31, %30 : vector<16x128xf32>
    %33 = math.log %32 : vector<16x128xf32>
    %34 = arith.addf %26, %33 : vector<16x128xf32>
    %cst_22 = arith.constant 0.000000e+00 : f32
    %35 = vector.broadcast %cst_22 : f32 to vector<16x128xf32>
    %36 = arith.subf %35, %34 : vector<16x128xf32>
    %37 = math.exp %36 : vector<16x128xf32>
    %cst_23 = arith.constant 1.000000e+00 : f32
    %38 = vector.broadcast %cst_23 : f32 to vector<16x128xf32>
    %39 = arith.addf %38, %37 : vector<16x128xf32>
    %40 = math.log %39 : vector<16x128xf32>
    %cst_24 = arith.constant 0.000000e+00 : f32
    %41 = vector.broadcast %cst_24 : f32 to vector<16x128xf32>
    %42 = arith.subf %41, %40 : vector<16x128xf32>
    %cst_25 = arith.constant 0.000000e+00 : f32
    %43 = vector.broadcast %cst_25 : f32 to vector<16x128xf32>
    %44 = arith.cmpf oge, %22, %43 : vector<16x128xf32>
    %cst_26 = arith.constant 0.000000e+00 : f32
    %45 = vector.broadcast %cst_26 : f32 to vector<16x128xf32>
    %46 = arith.maximumf %22, %45 : vector<16x128xf32>
    %cst_27 = arith.constant 5.000000e-01 : f32
    %47 = vector.broadcast %cst_27 : f32 to vector<16x128xf32>
    %48 = arith.addf %46, %47 : vector<16x128xf32>
    %49 = math.log %48 : vector<16x128xf32>
    %cst_28 = arith.constant 0.000000e+00 : f32
    %50 = vector.broadcast %cst_28 : f32 to vector<16x128xf32>
    %51 = arith.subf %50, %22 : vector<16x128xf32>
    %cst_29 = arith.constant 0.000000e+00 : f32
    %52 = vector.broadcast %cst_29 : f32 to vector<16x128xf32>
    %53 = arith.maximumf %51, %52 : vector<16x128xf32>
    %54 = math.absf %51 : vector<16x128xf32>
    %cst_30 = arith.constant 0.000000e+00 : f32
    %55 = vector.broadcast %cst_30 : f32 to vector<16x128xf32>
    %56 = arith.subf %55, %54 : vector<16x128xf32>
    %57 = math.exp %56 : vector<16x128xf32>
    %cst_31 = arith.constant 1.000000e+00 : f32
    %58 = vector.broadcast %cst_31 : f32 to vector<16x128xf32>
    %59 = arith.addf %58, %57 : vector<16x128xf32>
    %60 = math.log %59 : vector<16x128xf32>
    %61 = arith.addf %53, %60 : vector<16x128xf32>
    %cst_32 = arith.constant 0.000000e+00 : f32
    %62 = vector.broadcast %cst_32 : f32 to vector<16x128xf32>
    %63 = arith.subf %62, %61 : vector<16x128xf32>
    %64 = arith.select %44, %49, %63 : vector<16x128xi1>, vector<16x128xf32>
    %65 = tpu.iota {dimensions = array<i32: 1>} : vector<2x8x128xi32>
    %66 = vector.shape_cast %65 : vector<2x8x128xi32> to vector<16x128xi32>
    %c1_i32 = arith.constant 1 : i32
    %67 = vector.broadcast %c1_i32 : i32 to vector<16x128xi32>
    %68 = arith.cmpi sge, %66, %67 : vector<16x128xi32>
    %c1_i32_33 = arith.constant 1 : i32
    %69 = tpu.dynamic_rotate %42 by %c1_i32_33 dim 0 : vector<16x128xf32>, i32 -> vector<16x128xf32>
    %cst_34 = arith.constant 0.000000e+00 : f32
    %70 = vector.broadcast %cst_34 : f32 to vector<16x128xf32>
    %71 = arith.select %68, %69, %70 : vector<16x128xi1>, vector<16x128xf32>
    %72 = arith.addf %42, %71 : vector<16x128xf32>
    %c2_i32 = arith.constant 2 : i32
    %73 = vector.broadcast %c2_i32 : i32 to vector<16x128xi32>
    %74 = arith.cmpi sge, %66, %73 : vector<16x128xi32>
    %c2_i32_35 = arith.constant 2 : i32
    %75 = tpu.dynamic_rotate %72 by %c2_i32_35 dim 0 : vector<16x128xf32>, i32 -> vector<16x128xf32>
    %cst_36 = arith.constant 0.000000e+00 : f32
    %76 = vector.broadcast %cst_36 : f32 to vector<16x128xf32>
    %77 = arith.select %74, %75, %76 : vector<16x128xi1>, vector<16x128xf32>
    %78 = arith.addf %72, %77 : vector<16x128xf32>
    %c4_i32 = arith.constant 4 : i32
    %79 = vector.broadcast %c4_i32 : i32 to vector<16x128xi32>
    %80 = arith.cmpi sge, %66, %79 : vector<16x128xi32>
    %c4_i32_37 = arith.constant 4 : i32
    %81 = tpu.dynamic_rotate %78 by %c4_i32_37 dim 0 : vector<16x128xf32>, i32 -> vector<16x128xf32>
    %cst_38 = arith.constant 0.000000e+00 : f32
    %82 = vector.broadcast %cst_38 : f32 to vector<16x128xf32>
    %83 = arith.select %80, %81, %82 : vector<16x128xi1>, vector<16x128xf32>
    %84 = arith.addf %78, %83 : vector<16x128xf32>
    %85 = arith.addf %36, %64 : vector<16x128xf32>
    %86 = arith.subf %85, %84 : vector<16x128xf32>
    %c1_i32_39 = arith.constant 1 : i32
    %87 = vector.broadcast %c1_i32_39 : i32 to vector<16x128xi32>
    %88 = arith.cmpi sge, %66, %87 : vector<16x128xi32>
    %c1_i32_40 = arith.constant 1 : i32
    %89 = tpu.dynamic_rotate %86 by %c1_i32_40 dim 0 : vector<16x128xf32>, i32 -> vector<16x128xf32>
    %cst_41 = arith.constant -1.000000e+30 : f32
    %90 = vector.broadcast %cst_41 : f32 to vector<16x128xf32>
    %91 = arith.select %88, %89, %90 : vector<16x128xi1>, vector<16x128xf32>
    %92 = arith.maximumf %86, %91 : vector<16x128xf32>
    %93 = arith.subf %86, %91 : vector<16x128xf32>
    %94 = math.absf %93 : vector<16x128xf32>
    %cst_42 = arith.constant 0.000000e+00 : f32
    %95 = vector.broadcast %cst_42 : f32 to vector<16x128xf32>
    %96 = arith.subf %95, %94 : vector<16x128xf32>
    %97 = math.exp %96 : vector<16x128xf32>
    %cst_43 = arith.constant 1.000000e+00 : f32
    %98 = vector.broadcast %cst_43 : f32 to vector<16x128xf32>
    %99 = arith.addf %98, %97 : vector<16x128xf32>
    %100 = math.log %99 : vector<16x128xf32>
    %101 = arith.addf %92, %100 : vector<16x128xf32>
    %c2_i32_44 = arith.constant 2 : i32
    %102 = vector.broadcast %c2_i32_44 : i32 to vector<16x128xi32>
    %103 = arith.cmpi sge, %66, %102 : vector<16x128xi32>
    %c2_i32_45 = arith.constant 2 : i32
    %104 = tpu.dynamic_rotate %101 by %c2_i32_45 dim 0 : vector<16x128xf32>, i32 -> vector<16x128xf32>
    %cst_46 = arith.constant -1.000000e+30 : f32
    %105 = vector.broadcast %cst_46 : f32 to vector<16x128xf32>
    %106 = arith.select %103, %104, %105 : vector<16x128xi1>, vector<16x128xf32>
    %107 = arith.maximumf %101, %106 : vector<16x128xf32>
    %108 = arith.subf %101, %106 : vector<16x128xf32>
    %109 = math.absf %108 : vector<16x128xf32>
    %cst_47 = arith.constant 0.000000e+00 : f32
    %110 = vector.broadcast %cst_47 : f32 to vector<16x128xf32>
    %111 = arith.subf %110, %109 : vector<16x128xf32>
    %112 = math.exp %111 : vector<16x128xf32>
    %cst_48 = arith.constant 1.000000e+00 : f32
    %113 = vector.broadcast %cst_48 : f32 to vector<16x128xf32>
    %114 = arith.addf %113, %112 : vector<16x128xf32>
    %115 = math.log %114 : vector<16x128xf32>
    %116 = arith.addf %107, %115 : vector<16x128xf32>
    %c4_i32_49 = arith.constant 4 : i32
    %117 = vector.broadcast %c4_i32_49 : i32 to vector<16x128xi32>
    %118 = arith.cmpi sge, %66, %117 : vector<16x128xi32>
    %c4_i32_50 = arith.constant 4 : i32
    %119 = tpu.dynamic_rotate %116 by %c4_i32_50 dim 0 : vector<16x128xf32>, i32 -> vector<16x128xf32>
    %cst_51 = arith.constant -1.000000e+30 : f32
    %120 = vector.broadcast %cst_51 : f32 to vector<16x128xf32>
    %121 = arith.select %118, %119, %120 : vector<16x128xi1>, vector<16x128xf32>
    %122 = arith.maximumf %116, %121 : vector<16x128xf32>
    %123 = arith.subf %116, %121 : vector<16x128xf32>
    %124 = math.absf %123 : vector<16x128xf32>
    %cst_52 = arith.constant 0.000000e+00 : f32
    %125 = vector.broadcast %cst_52 : f32 to vector<16x128xf32>
    %126 = arith.subf %125, %124 : vector<16x128xf32>
    %127 = math.exp %126 : vector<16x128xf32>
    %cst_53 = arith.constant 1.000000e+00 : f32
    %128 = vector.broadcast %cst_53 : f32 to vector<16x128xf32>
    %129 = arith.addf %128, %127 : vector<16x128xf32>
    %130 = math.log %129 : vector<16x128xf32>
    %131 = arith.addf %122, %130 : vector<16x128xf32>
    %cst_54 = arith.constant -0.693147182 : f32
    %132 = vector.broadcast %cst_54 : f32 to vector<16x128xf32>
    %133 = arith.maximumf %132, %131 : vector<16x128xf32>
    %cst_55 = arith.constant -0.693147182 : f32
    %134 = vector.broadcast %cst_55 : f32 to vector<16x128xf32>
    %135 = arith.subf %134, %131 : vector<16x128xf32>
    %136 = math.absf %135 : vector<16x128xf32>
    %cst_56 = arith.constant 0.000000e+00 : f32
    %137 = vector.broadcast %cst_56 : f32 to vector<16x128xf32>
    %138 = arith.subf %137, %136 : vector<16x128xf32>
    %139 = math.exp %138 : vector<16x128xf32>
    %cst_57 = arith.constant 1.000000e+00 : f32
    %140 = vector.broadcast %cst_57 : f32 to vector<16x128xf32>
    %141 = arith.addf %140, %139 : vector<16x128xf32>
    %142 = math.log %141 : vector<16x128xf32>
    %143 = arith.addf %133, %142 : vector<16x128xf32>
    %144 = arith.addf %84, %143 : vector<16x128xf32>
    %145 = math.exp %144 : vector<16x128xf32>
    %c0_58 = arith.constant 0 : index
    %c0_59 = arith.constant 0 : index
    %146 = vector.load %arg8[%c0_58, %c0_59] : memref<128x128xf32, #tpu.memory_space<vmem>>, vector<128x128xf32>
    %cst_60 = arith.constant dense<0.000000e+00> : vector<16x128xf32>
    %147 = tpu.matmul %145, %146, %cst_60 {dimension_numbers = #tpu.dot_dimension_numbers<[1], [0], [0], [1], [0, 0, 1, 1], [], []>} : vector<16x128xf32>, vector<128x128xf32>, vector<16x128xf32> -> vector<16x128xf32>
    %c0_61 = arith.constant 0 : index
    %c0_62 = arith.constant 0 : index
    %148 = vector.load %arg9[%c0_61, %c0_62] : memref<1x128xf32, #tpu.memory_space<vmem>>, vector<1x128xf32>
    %149 = vector.broadcast %148 : vector<1x128xf32> to vector<16x128xf32>
    %150 = arith.addf %147, %149 : vector<16x128xf32>
    %cst_63 = arith.constant 0.000000e+00 : f32
    %151 = vector.broadcast %cst_63 : f32 to vector<16x128xf32>
    %152 = arith.maximumf %150, %151 : vector<16x128xf32>
    %c0_64 = arith.constant 0 : index
    %c0_65 = arith.constant 0 : index
    %153 = vector.load %arg10[%c0_64, %c0_65] : memref<128x128xf32, #tpu.memory_space<vmem>>, vector<128x128xf32>
    %cst_66 = arith.constant dense<0.000000e+00> : vector<16x128xf32>
    %154 = tpu.matmul %152, %153, %cst_66 {dimension_numbers = #tpu.dot_dimension_numbers<[1], [0], [0], [1], [0, 0, 1, 1], [], []>} : vector<16x128xf32>, vector<128x128xf32>, vector<16x128xf32> -> vector<16x128xf32>
    %c0_67 = arith.constant 0 : index
    %c0_68 = arith.constant 0 : index
    %155 = vector.load %arg11[%c0_67, %c0_68] : memref<1x128xf32, #tpu.memory_space<vmem>>, vector<1x128xf32>
    %156 = vector.broadcast %155 : vector<1x128xf32> to vector<16x128xf32>
    %157 = arith.addf %154, %156 : vector<16x128xf32>
    %158 = vector.shape_cast %145 : vector<16x128xf32> to vector<2x8x128xf32>
    %c0_69 = arith.constant 0 : index
    %c0_70 = arith.constant 0 : index
    %c0_71 = arith.constant 0 : index
    %159 = vector.load %arg13[%c0_69, %c0_70, %c0_71] : memref<2x8x128xf32, #tpu.memory_space<vmem>>, vector<2x8x128xf32>
    tpu.vector_store %arg13[%c0_69, %c0_70, %c0_71], %158 {strides = array<i32>} : memref<2x8x128xf32, #tpu.memory_space<vmem>>, vector<2x8x128xf32>,
    %160 = vector.shape_cast %157 : vector<16x128xf32> to vector<2x8x128xf32>
    %c0_72 = arith.constant 0 : index
    %c0_73 = arith.constant 0 : index
    %c0_74 = arith.constant 0 : index
    %161 = vector.load %arg12[%c0_72, %c0_73, %c0_74] : memref<2x8x128xf32, #tpu.memory_space<vmem>>, vector<2x8x128xf32>
    tpu.vector_store %arg12[%c0_72, %c0_73, %c0_74], %160 {strides = array<i32>} : memref<2x8x128xf32, #tpu.memory_space<vmem>>, vector<2x8x128xf32>,
    return
  }
  func.func @transform_0(%arg0: i32) -> (i32, i32, i32) {
    %c0_i32 = arith.constant 0 : i32
    %c0_i32_0 = arith.constant 0 : i32
    %c0_i32_1 = arith.constant 0 : i32
    return %arg0, %c0_i32, %c0_i32_0 : i32, i32, i32
  }
  func.func @transform_1(%arg0: i32) -> (i32, i32) {
    %c0_i32 = arith.constant 0 : i32
    %c0_i32_0 = arith.constant 0 : i32
    %c0_i32_1 = arith.constant 0 : i32
    return %c0_i32, %c0_i32_0 : i32, i32
  }
  func.func @transform_2(%arg0: i32) -> (i32, i32) {
    %c0_i32 = arith.constant 0 : i32
    %c0_i32_0 = arith.constant 0 : i32
    %c0_i32_1 = arith.constant 0 : i32
    return %c0_i32, %c0_i32_0 : i32, i32
  }
  func.func @transform_3(%arg0: i32) -> (i32, i32) {
    %c0_i32 = arith.constant 0 : i32
    %c0_i32_0 = arith.constant 0 : i32
    %c0_i32_1 = arith.constant 0 : i32
    return %c0_i32, %c0_i32_0 : i32, i32
  }
  func.func @transform_4(%arg0: i32) -> (i32, i32) {
    %c0_i32 = arith.constant 0 : i32
    %c0_i32_0 = arith.constant 0 : i32
    %c0_i32_1 = arith.constant 0 : i32
    return %c0_i32, %c0_i32_0 : i32, i32
  }
  func.func @transform_5(%arg0: i32) -> (i32, i32) {
    %c0_i32 = arith.constant 0 : i32
    %c0_i32_0 = arith.constant 0 : i32
    %c0_i32_1 = arith.constant 0 : i32
    return %c0_i32, %c0_i32_0 : i32, i32
  }
  func.func @transform_6(%arg0: i32) -> (i32, i32) {
    %c0_i32 = arith.constant 0 : i32
    %c0_i32_0 = arith.constant 0 : i32
    %c0_i32_1 = arith.constant 0 : i32
    return %c0_i32, %c0_i32_0 : i32, i32
  }
  func.func @transform_7(%arg0: i32) -> (i32, i32) {
    %c0_i32 = arith.constant 0 : i32
    %c0_i32_0 = arith.constant 0 : i32
    %c0_i32_1 = arith.constant 0 : i32
    return %c0_i32, %c0_i32_0 : i32, i32
  }
  func.func @transform_8(%arg0: i32) -> (i32, i32) {
    %c0_i32 = arith.constant 0 : i32
    %c0_i32_0 = arith.constant 0 : i32
    %c0_i32_1 = arith.constant 0 : i32
    return %c0_i32, %c0_i32_0 : i32, i32
  }
  func.func @transform_9(%arg0: i32) -> (i32, i32) {
    %c0_i32 = arith.constant 0 : i32
    %c0_i32_0 = arith.constant 0 : i32
    %c0_i32_1 = arith.constant 0 : i32
    return %c0_i32, %c0_i32_0 : i32, i32
  }
  func.func @transform_10(%arg0: i32) -> (i32, i32) {
    %c0_i32 = arith.constant 0 : i32
    %c0_i32_0 = arith.constant 0 : i32
    %c0_i32_1 = arith.constant 0 : i32
    return %c0_i32, %c0_i32_0 : i32, i32
  }
  func.func @transform_11(%arg0: i32) -> (i32, i32, i32) {
    %c0_i32 = arith.constant 0 : i32
    %c0_i32_0 = arith.constant 0 : i32
    %c0_i32_1 = arith.constant 0 : i32
    return %arg0, %c0_i32, %c0_i32_0 : i32, i32, i32
  }
  func.func @transform_12(%arg0: i32) -> (i32, i32, i32) {
    %c0_i32 = arith.constant 0 : i32
    %c0_i32_0 = arith.constant 0 : i32
    %c0_i32_1 = arith.constant 0 : i32
    return %arg0, %c0_i32, %c0_i32_0 : i32, i32, i32
  }
}

</mosaic_0001>

<llo_original>
// kernel: tpu_custom_call.1
$region0: #{tpu_custom_call.1}
  #allocation0 [shape = 'u32[]', space=smem, size = 0x4, offset = 0x4, fixed_abs, tag = 'smem constant byte address 0x4 - core index']
  #allocation1 [shape = 'u32[72,128]{1,0:T(1,128)}', space=vmem, size = 0x9000, scoped, tag = 'internal scratch']
  %s0 = inlined_call_operand.hbm [shape: f32[2,8,16], index: 0, kind: input, shape index: {}]
  %s1 = inlined_call_operand.hbm [shape: f32[16,128], index: 1, kind: input, shape index: {}]
  %s2 = inlined_call_operand.vmem [shape: f32[1,128], index: 2, kind: input, shape index: {}]
  %s3 = inlined_call_operand.hbm [shape: f32[128,128], index: 3, kind: input, shape index: {}]
  %s4 = inlined_call_operand.hbm [shape: f32[1,128], index: 4, kind: input, shape index: {}]
  %s5 = inlined_call_operand.hbm [shape: f32[128,256], index: 5, kind: input, shape index: {}]
  %s6 = inlined_call_operand.vmem [shape: f32[1,256], index: 6, kind: input, shape index: {}]
  %s7 = inlined_call_operand.hbm [shape: f32[128,128], index: 7, kind: input, shape index: {}]
  %s8 = inlined_call_operand.vmem [shape: f32[1,128], index: 8, kind: input, shape index: {}]
  %s9 = inlined_call_operand.hbm [shape: f32[128,128], index: 9, kind: input, shape index: {}]
  %s10 = inlined_call_operand.vmem [shape: f32[1,128], index: 10, kind: input, shape index: {}]
  %s11 = inlined_call_operand.hbm [shape: f32[2,8,128], index: 11, kind: output, shape index: {0}]
  %s12 = inlined_call_operand.hbm [shape: f32[2,8,128], index: 12, kind: output, shape index: {1}]
  %13 = xla_tuple %s11, %s12
  %s14 = sld [smem:[#allocation0]]
  $region90: #{tpu_custom_call.1} parent=0
    _
  %s16 = ssub.s32 1, %s14
  %s17 = scalar_select 0, %s16, %s14
  $region1: #{tpu_custom_call.1} parent=0
    #allocation2 [shape = 'u8[8192]{0}', space=vmem, size = 0x2000, scoped, tag = 'input window, operand 0, single buffered']
    #allocation3 [shape = 's32[1]{0}', space=sflag, size = 0x4, scoped, tag = 'scoped memory for tpu_custom_call.1']
    #allocation4 [shape = 's32[1]{0}', space=sflag, size = 0x4, scoped, tag = 'scoped memory for tpu_custom_call.1']
    #allocation5 [shape = 'u8[8192]{0}', space=vmem, size = 0x2000, scoped, tag = 'input window, operand 1, single buffered']
    #allocation6 [shape = 's32[1]{0}', space=sflag, size = 0x4, scoped, tag = 'scoped memory for tpu_custom_call.1']
    #allocation7 [shape = 'u8[65536]{0}', space=vmem, size = 0x10000, scoped, tag = 'input window, operand 3, single buffered']
    #allocation8 [shape = 'u8[512]{0}', space=vmem, size = 0x400, scoped, tag = 'input window, operand 4, single buffered']
    #allocation9 [shape = 's32[1]{0}', space=sflag, size = 0x4, scoped, tag = 'scoped memory for tpu_custom_call.1']
    #allocation10 [shape = 'u8[131072]{0}', space=vmem, size = 0x20000, scoped, tag = 'input window, operand 5, single buffered']
    #allocation11 [shape = 'u8[65536]{0}', space=vmem, size = 0x10000, scoped, tag = 'input window, operand 7, single buffered']
    #allocation12 [shape = 's32[1]{0}', space=sflag, size = 0x4, scoped, tag = 'scoped memory for tpu_custom_call.1']
    #allocation13 [shape = 'u8[65536]{0}', space=vmem, size = 0x10000, scoped, tag = 'input window, operand 9, single buffered']
    #allocation14 [shape = 'u8[8192]{0}', space=vmem, size = 0x2000, scoped, tag = 'output window, operand 0, single buffered']
    #allocation15 [shape = 'u8[8192]{0}', space=vmem, size = 0x2000, scoped, tag = 'output window, operand 1, single buffered']
    #allocation16 [shape = 's32[1]{0}', space=sflag, size = 0x4, scoped, tag = 'scoped memory for tpu_custom_call.1']
    %18 = vsyncpa [#allocation3], 0
    %19 = vsyncpa [#allocation6], 0
    %20 = vsyncpa [#allocation9], 0
    %21 = vsyncpa [#allocation12], 0
    %22 = vsyncpa [#allocation4], 0
    %23 = vsyncpa [#allocation16], 0
    // Predicated region
    $region2: #{tpu_custom_call.1} parent=1 // pred_check
      _
    $region3: #{tpu_custom_call.1} parent=1 // pred_check_branch
      %25 = sbr.rel (0) target = $region5
    $region4: #{tpu_custom_call.1} parent=1 // pred_region
      %27 = vsyncadd [#allocation3], 0
      %s28 = sshll.u32 %s0, 4
      %s29 = int_to_ptr.hbm [resolvable:$true] %s28
      %s30 = sshll.u32 [#allocation2], 4
      %s31 = int_to_ptr.vmem [resolvable:$true] %s30
      %36 = dma.hbm_to_vmem [thread:$0]  %s29, 256, %s31, [#allocation3], 128, 128, 8
    $region5: #{tpu_custom_call.1} parent=1 // pred_fallthru
      _
    // Predicated region
    $region6: #{tpu_custom_call.1} parent=1 // pred_check
      _
    $region7: #{tpu_custom_call.1} parent=1 // pred_check_branch
      %38 = sbr.rel (0) target = $region9
    $region8: #{tpu_custom_call.1} parent=1 // pred_region
      %40 = vsyncadd [#allocation6], 0
      %s41 = sshll.u32 %s1, 4
      %s42 = int_to_ptr.hbm [resolvable:$true] %s41
      %s43 = sshll.u32 [#allocation5], 4
      %s44 = int_to_ptr.vmem [resolvable:$true] %s43
      %49 = dma.hbm_to_vmem [thread:$0]  %s42, 256, %s44, [#allocation6], 128, 128, 8
    $region9: #{tpu_custom_call.1} parent=1 // pred_fallthru
      _
    // Predicated region
    $region10: #{tpu_custom_call.1} parent=1 // pred_check
      _
    $region11: #{tpu_custom_call.1} parent=1 // pred_check_branch
      %51 = sbr.rel (0) target = $region13
    $region12: #{tpu_custom_call.1} parent=1 // pred_region
      _
    $region13: #{tpu_custom_call.1} parent=1 // pred_fallthru
      _
    // Predicated region
    $region14: #{tpu_custom_call.1} parent=1 // pred_check
      _
    $region15: #{tpu_custom_call.1} parent=1 // pred_check_branch
      %53 = sbr.rel (0) target = $region17
    $region16: #{tpu_custom_call.1} parent=1 // pred_region
      %55 = vsyncadd [#allocation6], 0
      %s56 = sshll.u32 %s3, 4
      %s57 = int_to_ptr.hbm [resolvable:$true] %s56
      %s58 = sshll.u32 [#allocation7], 4
      %s59 = int_to_ptr.vmem [resolvable:$true] %s58
      %64 = dma.hbm_to_vmem [thread:$0]  %s57, 2048, %s59, [#allocation6], 128, 128, 8
    $region17: #{tpu_custom_call.1} parent=1 // pred_fallthru
      _
    // Predicated region
    $region18: #{tpu_custom_call.1} parent=1 // pred_check
      _
    $region19: #{tpu_custom_call.1} parent=1 // pred_check_branch
      %66 = sbr.rel (0) target = $region21
    $region20: #{tpu_custom_call.1} parent=1 // pred_region
      %68 = vsyncadd [#allocation9], 0
      %s70 = sshll.u32 %s4, 4
      %s71 = int_to_ptr.hbm [resolvable:$true] %s70
      %s72 = sshll.u32 [#allocation8], 4
      %s73 = int_to_ptr.vmem [resolvable:$true] %s72
      %75 = dma.hbm_to_vmem [thread:$0]  %s71, 16, %s73, [#allocation9]
    $region21: #{tpu_custom_call.1} parent=1 // pred_fallthru
      _
    // Predicated region
    $region22: #{tpu_custom_call.1} parent=1 // pred_check
      _
    $region23: #{tpu_custom_call.1} parent=1 // pred_check_branch
      %77 = sbr.rel (0) target = $region25
    $region24: #{tpu_custom_call.1} parent=1 // pred_region
      %79 = vsyncadd [#allocation9], 0
      %s80 = sshll.u32 %s5, 4
      %s81 = int_to_ptr.hbm [resolvable:$true] %s80
      %s82 = sshll.u32 [#allocation10], 4
      %s83 = int_to_ptr.vmem [resolvable:$true] %s82
      %88 = dma.hbm_to_vmem [thread:$0]  %s81, 4096, %s83, [#allocation9], 256, 256, 16
    $region25: #{tpu_custom_call.1} parent=1 // pred_fallthru
      _
    // Predicated region
    $region26: #{tpu_custom_call.1} parent=1 // pred_check
      _
    $region27: #{tpu_custom_call.1} parent=1 // pred_check_branch
      %90 = sbr.rel (0) target = $region29
    $region28: #{tpu_custom_call.1} parent=1 // pred_region
      _
    $region29: #{tpu_custom_call.1} parent=1 // pred_fallthru
      _
    // Predicated region
    $region30: #{tpu_custom_call.1} parent=1 // pred_check
      _
    $region31: #{tpu_custom_call.1} parent=1 // pred_check_branch
      %92 = sbr.rel (0) target = $region33
    $region32: #{tpu_custom_call.1} parent=1 // pred_region
      %94 = vsyncadd [#allocation12], 0
      %s95 = sshll.u32 %s7, 4
      %s96 = int_to_ptr.hbm [resolvable:$true] %s95
      %s97 = sshll.u32 [#allocation11], 4
      %s98 = int_to_ptr.vmem [resolvable:$true] %s97
      %103 = dma.hbm_to_vmem [thread:$0]  %s96, 2048, %s98, [#allocation12], 128, 128, 8
    $region33: #{tpu_custom_call.1} parent=1 // pred_fallthru
      _
    // Predicated region
    $region34: #{tpu_custom_call.1} parent=1 // pred_check
      _
    $region35: #{tpu_custom_call.1} parent=1 // pred_check_branch
      %105 = sbr.rel (0) target = $region37
    $region36: #{tpu_custom_call.1} parent=1 // pred_region
      _
    $region37: #{tpu_custom_call.1} parent=1 // pred_fallthru
      _
    // Predicated region
    $region38: #{tpu_custom_call.1} parent=1 // pred_check
      _
    $region39: #{tpu_custom_call.1} parent=1 // pred_check_branch
      %107 = sbr.rel (0) target = $region41
    $region40: #{tpu_custom_call.1} parent=1 // pred_region
      %109 = vsyncadd [#allocation12], 0
      %s110 = sshll.u32 %s9, 4
      %s111 = int_to_ptr.hbm [resolvable:$true] %s110
      %s112 = sshll.u32 [#allocation13], 4
      %s113 = int_to_ptr.vmem [resolvable:$true] %s112
      %118 = dma.hbm_to_vmem [thread:$0]  %s111, 2048, %s113, [#allocation12], 128, 128, 8
    $region41: #{tpu_custom_call.1} parent=1 // pred_fallthru
      _
    // Predicated region
    $region42: #{tpu_custom_call.1} parent=1 // pred_check
      _
    $region43: #{tpu_custom_call.1} parent=1 // pred_check_branch
      %120 = sbr.rel (0) target = $region45
    $region44: #{tpu_custom_call.1} parent=1 // pred_region
      _
    $region45: #{tpu_custom_call.1} parent=1 // pred_fallthru
      _
    // Predicated region
    $region46: #{tpu_custom_call.1} parent=1 // pred_check
      _
    $region47: #{tpu_custom_call.1} parent=1 // pred_check_branch
      %122 = sbr.rel (0) target = $region49
    $region48: #{tpu_custom_call.1} parent=1 // pred_region
      %124 = dma.done [#allocation3], 256
    $region49: #{tpu_custom_call.1} parent=1 // pred_fallthru
      _
    // Predicated region
    $region50: #{tpu_custom_call.1} parent=1 // pred_check
      _
    $region51: #{tpu_custom_call.1} parent=1 // pred_check_branch
      %126 = sbr.rel (0) target = $region53
    $region52: #{tpu_custom_call.1} parent=1 // pred_region
      %128 = dma.done [#allocation6], 256
    $region53: #{tpu_custom_call.1} parent=1 // pred_fallthru
      _
    // Predicated region
    $region54: #{tpu_custom_call.1} parent=1 // pred_check
      _
    $region55: #{tpu_custom_call.1} parent=1 // pred_check_branch
      %130 = sbr.rel (0) target = $region57
    $region56: #{tpu_custom_call.1} parent=1 // pred_region
      %132 = dma.done [#allocation6], 2048
    $region57: #{tpu_custom_call.1} parent=1 // pred_fallthru
      _
    // Predicated region
    $region58: #{tpu_custom_call.1} parent=1 // pred_check
      _
    $region59: #{tpu_custom_call.1} parent=1 // pred_check_branch
      %134 = sbr.rel (0) target = $region61
    $region60: #{tpu_custom_call.1} parent=1 // pred_region
      %136 = dma.done [#allocation9], 16
    $region61: #{tpu_custom_call.1} parent=1 // pred_fallthru
      _
    // Predicated region
    $region62: #{tpu_custom_call.1} parent=1 // pred_check
      _
    $region63: #{tpu_custom_call.1} parent=1 // pred_check_branch
      %138 = sbr.rel (0) target = $region65
    $region64: #{tpu_custom_call.1} parent=1 // pred_region
      %140 = dma.done [#allocation9], 4096
    $region65: #{tpu_custom_call.1} parent=1 // pred_fallthru
      _
    // Predicated region
    $region66: #{tpu_custom_call.1} parent=1 // pred_check
      _
    $region67: #{tpu_custom_call.1} parent=1 // pred_check_branch
      %142 = sbr.rel (0) target = $region69
    $region68: #{tpu_custom_call.1} parent=1 // pred_region
      %144 = dma.done [#allocation12], 2048
    $region69: #{tpu_custom_call.1} parent=1 // pred_fallthru
      _
    // Predicated region
    $region70: #{tpu_custom_call.1} parent=1 // pred_check
      _
    $region71: #{tpu_custom_call.1} parent=1 // pred_check_branch
      %146 = sbr.rel (0) target = $region73
    $region72: #{tpu_custom_call.1} parent=1 // pred_region
      %148 = dma.done [#allocation12], 2048
    $region73: #{tpu_custom_call.1} parent=1 // pred_fallthru
      _
    %v149 = vld [vmem:[#allocation2] sm:$0xff]
    %v150 = vld [vmem:[#allocation2 + $0x8] sm:$0xff]
    %v151 = vld [vmem:[#allocation5] sm:$0xff]
    %v152 = vld [vmem:[#allocation5 + $0x8] sm:$0xff]
    %v153 = vld [vmem:[%s2] sm:$0x1]
    %v155 = vperm.slane %v153, 0
    %vm157 = vcmask 130048
    %v159 = vsel %vm157, %v149, 0
    %v162 = vsel %vm157, %v150, 0
    %164 = vmatpush.msra.mxu0 0.0
    %165 = vmatpush.msra.mxu0 0.0
    %166 = vmatpush.msra.mxu0 0.0
    %167 = vmatpush.msra.mxu0 0.0
    %168 = vmatpush.msra.mxu0 0.0
    %169 = vmatpush.msra.mxu0 0.0
    %170 = vmatpush.msra.mxu0 0.0
    %171 = vmatpush.msra.mxu0 0.0
    %172 = vmatpush.msra.mxu0 0.0
    %173 = vmatpush.msra.mxu0 0.0
    %174 = vmatpush.msra.mxu0 0.0
    %175 = vmatpush.msra.mxu0 0.0
    %176 = vmatpush.msra.mxu0 0.0
    %177 = vmatpush.msra.mxu0 0.0
    %178 = vmatpush.msra.mxu0 %v152
    %179 = vmatpush.msra.mxu0 %v151
    %180 = vmatmul.f32.gmra.mxu0 %v159
    %v181 = vpop.f32.mrf.mxu0
    %v182 = vadd.f32 %v155, %v181
    %183 = vmatmul.f32.gmra.mxu0 %v162
    %v184 = vpop.f32.mrf.mxu0
    %v185 = vadd.f32 %v155, %v184
    %186 = vdwg.mxu0
    %v187 = vmax.f32 %v182, 0.0
    %v188 = vmax.f32 %v185, 0.0
    %v189 = vld [vmem:[#allocation7] sm:$0xff]
    %v190 = vld [vmem:[#allocation7 + $0x8] sm:$0xff]
    %v191 = vld [vmem:[#allocation7 + $0x10] sm:$0xff]
    %v192 = vld [vmem:[#allocation7 + $0x18] sm:$0xff]
    %v193 = vld [vmem:[#allocation7 + $0x20] sm:$0xff]
    %v194 = vld [vmem:[#allocation7 + $0x28] sm:$0xff]
    %v195 = vld [vmem:[#allocation7 + $0x30] sm:$0xff]
    %v196 = vld [vmem:[#allocation7 + $0x38] sm:$0xff]
    %v197 = vld [vmem:[#allocation7 + $0x40] sm:$0xff]
    %v198 = vld [vmem:[#allocation7 + $0x48] sm:$0xff]
    %v199 = vld [vmem:[#allocation7 + $0x50] sm:$0xff]
    %v200 = vld [vmem:[#allocation7 + $0x58] sm:$0xff]
    %v201 = vld [vmem:[#allocation7 + $0x60] sm:$0xff]
    %v202 = vld [vmem:[#allocation7 + $0x68] sm:$0xff]
    %v203 = vld [vmem:[#allocation7 + $0x70] sm:$0xff]
    %v204 = vld [vmem:[#allocation7 + $0x78] sm:$0xff]
    %v205 = vld [vmem:[#allocation8] sm:$0x1]
    %v207 = vperm.slane %v205, 0
    %209 = vmatpush.msra.mxu0 %v204
    %210 = vmatpush.msra.mxu0 %v203
    %211 = vmatpush.msra.mxu0 %v202
    %212 = vmatpush.msra.mxu0 %v201
    %213 = vmatpush.msra.mxu0 %v200
    %214 = vmatpush.msra.mxu0 %v199
    %215 = vmatpush.msra.mxu0 %v198
    %216 = vmatpush.msra.mxu0 %v197
    %217 = vmatpush.msra.mxu0 %v196
    %218 = vmatpush.msra.mxu0 %v195
    %219 = vmatpush.msra.mxu0 %v194
    %220 = vmatpush.msra.mxu0 %v193
    %221 = vmatpush.msra.mxu0 %v192
    %222 = vmatpush.msra.mxu0 %v191
    %223 = vmatpush.msra.mxu0 %v190
    %224 = vmatpush.msra.mxu0 %v189
    %225 = vmatmul.f32.gmra.mxu0 %v187
    %v226 = vpop.f32.mrf.mxu0
    %v227 = vadd.f32 %v207, %v226
    %228 = vmatmul.f32.gmra.mxu0 %v188
    %v229 = vpop.f32.mrf.mxu0
    %v230 = vadd.f32 %v207, %v229
    %231 = vdwg.mxu0
    %v232 = vmax.f32 %v227, 0.0
    %v233 = vmax.f32 %v230, 0.0
    %v234 = vld [vmem:[#allocation10] sm:$0xff]
    %v235 = vld [vmem:[#allocation10 + $0x8] sm:$0xff]
    %v236 = vld [vmem:[#allocation10 + $0x10] sm:$0xff]
    %v237 = vld [vmem:[#allocation10 + $0x18] sm:$0xff]
    %v238 = vld [vmem:[#allocation10 + $0x20] sm:$0xff]
    %v239 = vld [vmem:[#allocation10 + $0x28] sm:$0xff]
    %v240 = vld [vmem:[#allocation10 + $0x30] sm:$0xff]
    %v241 = vld [vmem:[#allocation10 + $0x38] sm:$0xff]
    %v242 = vld [vmem:[#allocation10 + $0x40] sm:$0xff]
    %v243 = vld [vmem:[#allocation10 + $0x48] sm:$0xff]
    %v244 = vld [vmem:[#allocation10 + $0x50] sm:$0xff]
    %v245 = vld [vmem:[#allocation10 + $0x58] sm:$0xff]
    %v246 = vld [vmem:[#allocation10 + $0x60] sm:$0xff]
    %v247 = vld [vmem:[#allocation10 + $0x68] sm:$0xff]
    %v248 = vld [vmem:[#allocation10 + $0x70] sm:$0xff]
    %v249 = vld [vmem:[#allocation10 + $0x78] sm:$0xff]
    %v250 = vld [vmem:[#allocation10 + $0x80] sm:$0xff]
    %v251 = vld [vmem:[#allocation10 + $0x88] sm:$0xff]
    %v252 = vld [vmem:[#allocation10 + $0x90] sm:$0xff]
    %v253 = vld [vmem:[#allocation10 + $0x98] sm:$0xff]
    %v254 = vld [vmem:[#allocation10 + $0xa0] sm:$0xff]
    %v255 = vld [vmem:[#allocation10 + $0xa8] sm:$0xff]
    %v256 = vld [vmem:[#allocation10 + $0xb0] sm:$0xff]
    %v257 = vld [vmem:[#allocation10 + $0xb8] sm:$0xff]
    %v258 = vld [vmem:[#allocation10 + $0xc0] sm:$0xff]
    %v259 = vld [vmem:[#allocation10 + $0xc8] sm:$0xff]
    %v260 = vld [vmem:[#allocation10 + $0xd0] sm:$0xff]
    %v261 = vld [vmem:[#allocation10 + $0xd8] sm:$0xff]
    %v262 = vld [vmem:[#allocation10 + $0xe0] sm:$0xff]
    %v263 = vld [vmem:[#allocation10 + $0xe8] sm:$0xff]
    %v264 = vld [vmem:[#allocation10 + $0xf0] sm:$0xff]
    %v265 = vld [vmem:[#allocation10 + $0xf8] sm:$0xff]
    %v266 = vld [vmem:[%s6] sm:$0x3]
    %v268 = vperm.slane %v266, 0
    %v269 = vperm.slane %v266, 1
    %272 = vmatpush.msra.mxu0 %v264
    %273 = vmatpush.msra.mxu0 %v262
    %274 = vmatpush.msra.mxu0 %v260
    %275 = vmatpush.msra.mxu0 %v258
    %276 = vmatpush.msra.mxu0 %v256
    %277 = vmatpush.msra.mxu0 %v254
    %278 = vmatpush.msra.mxu0 %v252
    %279 = vmatpush.msra.mxu0 %v250
    %280 = vmatpush.msra.mxu0 %v248
    %281 = vmatpush.msra.mxu0 %v246
    %282 = vmatpush.msra.mxu0 %v244
    %283 = vmatpush.msra.mxu0 %v242
    %284 = vmatpush.msra.mxu0 %v240
    %285 = vmatpush.msra.mxu0 %v238
    %286 = vmatpush.msra.mxu0 %v236
    %287 = vmatpush.msra.mxu0 %v234
    %288 = vmatmul.f32.gmra.mxu0 %v232
    %v289 = vpop.f32.mrf.mxu0
    %v290 = vadd.f32 %v268, %v289
    %291 = vmatmul.f32.gmra.mxu0 %v233
    %v292 = vpop.f32.mrf.mxu0
    %v293 = vadd.f32 %v268, %v292
    %294 = vdwg.mxu0
    %295 = vmatpush.msra.mxu0 %v265
    %296 = vmatpush.msra.mxu0 %v263
    %297 = vmatpush.msra.mxu0 %v261
    %298 = vmatpush.msra.mxu0 %v259
    %299 = vmatpush.msra.mxu0 %v257
    %300 = vmatpush.msra.mxu0 %v255
    %301 = vmatpush.msra.mxu0 %v253
    %302 = vmatpush.msra.mxu0 %v251
    %303 = vmatpush.msra.mxu0 %v249
    %304 = vmatpush.msra.mxu0 %v247
    %305 = vmatpush.msra.mxu0 %v245
    %306 = vmatpush.msra.mxu0 %v243
    %307 = vmatpush.msra.mxu0 %v241
    %308 = vmatpush.msra.mxu0 %v239
    %309 = vmatpush.msra.mxu0 %v237
    %310 = vmatpush.msra.mxu0 %v235
    %311 = vmatmul.f32.gmra.mxu0 %v232
    %v312 = vpop.f32.mrf.mxu0
    %v313 = vadd.f32 %v269, %v312
    %314 = vmatmul.f32.gmra.mxu0 %v233
    %v315 = vpop.f32.mrf.mxu0
    %v316 = vadd.f32 %v269, %v315
    %317 = vdwg.mxu0
    %v318 = vsub.f32 0.0, %v290
    %v319 = vsub.f32 0.0, %v293
    %v320 = vmax.f32 %v318, 0.0
    %v321 = vmax.f32 %v319, 0.0
    %v322 = vand.u32 2147483647, %v318
    %v323 = vand.u32 2147483647, %v319
    %v324 = vsub.f32 0.0, %v322
    %v325 = vsub.f32 0.0, %v323
    %v326 = vmul.f32 %v324, 1.442695
    %v327 = vpow.pop %v326
    %v328 = vmul.f32 %v325, 1.442695
    %v329 = vpow.pop %v328
    %v330 = vadd.f32 %v327, 1.0
    %v331 = vadd.f32 %v329, 1.0
    %v332 = vlog2.pop %v330
    %v333 = vmul.f32 %v332, 0.6931472
    %v334 = vlog2.pop %v331
    %v335 = vmul.f32 %v334, 0.6931472
    %v336 = vadd.f32 %v320, %v333
    %v337 = vadd.f32 %v321, %v335
    %v338 = vsub.f32 0.0, %v336
    %v339 = vsub.f32 0.0, %v337
    %v340 = vmul.f32 %v338, 1.442695
    %v341 = vpow.pop %v340
    %v342 = vmul.f32 %v339, 1.442695
    %v343 = vpow.pop %v342
    %v344 = vadd.f32 %v341, 1.0
    %v345 = vadd.f32 %v343, 1.0
    %v346 = vlog2.pop %v344
    %v347 = vmul.f32 %v346, 0.6931472
    %v348 = vlog2.pop %v345
    %v349 = vmul.f32 %v348, 0.6931472
    %v350 = vsub.f32 0.0, %v347
    %v351 = vsub.f32 0.0, %v349
    %vm352 = vcmp.ge.f32.partialorder %v313, 0.0
    %vm353 = vcmp.ge.f32.partialorder %v316, 0.0
    %v354 = vmax.f32 %v313, 0.0
    %v355 = vmax.f32 %v316, 0.0
    %v356 = vadd.f32 %v354, 0.5
    %v357 = vadd.f32 %v355, 0.5
    %v358 = vlog2.pop %v356
    %v359 = vmul.f32 %v358, 0.6931472
    %v360 = vlog2.pop %v357
    %v361 = vmul.f32 %v360, 0.6931472
    %v362 = vsub.f32 0.0, %v313
    %v363 = vsub.f32 0.0, %v316
    %v364 = vmax.f32 %v362, 0.0
    %v365 = vmax.f32 %v363, 0.0
    %v366 = vand.u32 2147483647, %v362
    %v367 = vand.u32 2147483647, %v363
    %v368 = vsub.f32 0.0, %v366
    %v369 = vsub.f32 0.0, %v367
    %v370 = vmul.f32 %v368, 1.442695
    %v371 = vpow.pop %v370
    %v372 = vmul.f32 %v369, 1.442695
    %v373 = vpow.pop %v372
    %v374 = vadd.f32 %v371, 1.0
    %v375 = vadd.f32 %v373, 1.0
    %v376 = vlog2.pop %v374
    %v377 = vmul.f32 %v376, 0.6931472
    %v378 = vlog2.pop %v375
    %v379 = vmul.f32 %v378, 0.6931472
    %v380 = vadd.f32 %v364, %v377
    %v381 = vadd.f32 %v365, %v379
    %v382 = vsub.f32 0.0, %v380
    %v383 = vsub.f32 0.0, %v381
    %v384 = vsel %vm352, %v359, %v382
    %v385 = vsel %vm353, %v361, %v383
    %v386 = vlaneseq
    %v387 = vshrl.u32 %v386, 7
    %vm388 = vcmp.ge.s32.totalorder %v387, 1
    %v389 = vrot.slane %v350, 7
    %v390 = vrot.slane %v351, 7
    %vm391 = vcmp.lt.s32.totalorder %v387, 1
    %v392 = vsel %vm391, %v389, %v390
    %v393 = vsel %vm391, %v390, %v389
    %v394 = vsel %vm388, %v393, 0.0
    %v395 = vsel %vm388, %v392, 0.0
    %v396 = vadd.f32 %v350, %v394
    %v397 = vadd.f32 %v351, %v395
    %vm398 = vcmp.ge.s32.totalorder %v387, 2
    %v399 = vrot.slane %v396, 6
    %v400 = vrot.slane %v397, 6
    %vm401 = vcmp.lt.s32.totalorder %v387, 2
    %v402 = vsel %vm401, %v399, %v400
    %v403 = vsel %vm401, %v400, %v399
    %v404 = vsel %vm398, %v403, 0.0
    %v405 = vsel %vm398, %v402, 0.0
    %v406 = vadd.f32 %v396, %v404
    %v407 = vadd.f32 %v397, %v405
    %vm408 = vcmp.ge.s32.totalorder %v387, 4
    %v409 = vrot.slane %v406, 4
    %v410 = vrot.slane %v407, 4
    %vm411 = vcmp.lt.s32.totalorder %v387, 4
    %v412 = vsel %vm411, %v409, %v410
    %v413 = vsel %vm411, %v410, %v409
    %v414 = vsel %vm408, %v413, 0.0
    %v415 = vsel %vm408, %v412, 0.0
    %v416 = vadd.f32 %v406, %v414
    %v417 = vadd.f32 %v407, %v415
    %v418 = vadd.f32 %v338, %v384
    %v419 = vadd.f32 %v339, %v385
    %v420 = vsub.f32 %v418, %v416
    %v421 = vsub.f32 %v419, %v417
    %v422 = vrot.slane %v420, 7
    %v423 = vrot.slane %v421, 7
    %v424 = vsel %vm391, %v422, %v423
    %v425 = vsel %vm391, %v423, %v422
    %v426 = vsel %vm388, %v425, -1e+30
    %v427 = vsel %vm388, %v424, -1e+30
    %v428 = vmax.f32 %v420, %v426
    %v429 = vmax.f32 %v421, %v427
    %v430 = vsub.f32 %v420, %v426
    %v431 = vsub.f32 %v421, %v427
    %v432 = vand.u32 2147483647, %v430
    %v433 = vand.u32 2147483647, %v431
    %v434 = vsub.f32 0.0, %v432
    %v435 = vsub.f32 0.0, %v433
    %v436 = vmul.f32 %v434, 1.442695
    %v437 = vpow.pop %v436
    %v438 = vmul.f32 %v435, 1.442695
    %v439 = vpow.pop %v438
    %v440 = vadd.f32 %v437, 1.0
    %v441 = vadd.f32 %v439, 1.0
    %v442 = vlog2.pop %v440
    %v443 = vmul.f32 %v442, 0.6931472
    %v444 = vlog2.pop %v441
    %v445 = vmul.f32 %v444, 0.6931472
    %v446 = vadd.f32 %v428, %v443
    %v447 = vadd.f32 %v429, %v445
    %v448 = vrot.slane %v446, 6
    %v449 = vrot.slane %v447, 6
    %v450 = vsel %vm401, %v448, %v449
    %v451 = vsel %vm401, %v449, %v448
    %v452 = vsel %vm398, %v451, -1e+30
    %v453 = vsel %vm398, %v450, -1e+30
    %v454 = vmax.f32 %v446, %v452
    %v455 = vmax.f32 %v447, %v453
    %v456 = vsub.f32 %v446, %v452
    %v457 = vsub.f32 %v447, %v453
    %v458 = vand.u32 2147483647, %v456
    %v459 = vand.u32 2147483647, %v457
    %v460 = vsub.f32 0.0, %v458
    %v461 = vsub.f32 0.0, %v459
    %v462 = vmul.f32 %v460, 1.442695
    %v463 = vpow.pop %v462
    %v464 = vmul.f32 %v461, 1.442695
    %v465 = vpow.pop %v464
    %v466 = vadd.f32 %v463, 1.0
    %v467 = vadd.f32 %v465, 1.0
    %v468 = vlog2.pop %v466
    %v469 = vmul.f32 %v468, 0.6931472
    %v470 = vlog2.pop %v467
    %v471 = vmul.f32 %v470, 0.6931472
    %v472 = vadd.f32 %v454, %v469
    %v473 = vadd.f32 %v455, %v471
    %v474 = vrot.slane %v472, 4
    %v475 = vrot.slane %v473, 4
    %v476 = vsel %vm411, %v474, %v475
    %v477 = vsel %vm411, %v475, %v474
    %v478 = vsel %vm408, %v477, -1e+30
    %v479 = vsel %vm408, %v476, -1e+30
    %v480 = vmax.f32 %v472, %v478
    %v481 = vmax.f32 %v473, %v479
    %v482 = vsub.f32 %v472, %v478
    %v483 = vsub.f32 %v473, %v479
    %v484 = vand.u32 2147483647, %v482
    %v485 = vand.u32 2147483647, %v483
    %v486 = vsub.f32 0.0, %v484
    %v487 = vsub.f32 0.0, %v485
    %v488 = vmul.f32 %v486, 1.442695
    %v489 = vpow.pop %v488
    %v490 = vmul.f32 %v487, 1.442695
    %v491 = vpow.pop %v490
    %v492 = vadd.f32 %v489, 1.0
    %v493 = vadd.f32 %v491, 1.0
    %v494 = vlog2.pop %v492
    %v495 = vmul.f32 %v494, 0.6931472
    %v496 = vlog2.pop %v493
    %v497 = vmul.f32 %v496, 0.6931472
    %v498 = vadd.f32 %v480, %v495
    %v499 = vadd.f32 %v481, %v497
    %v500 = vmax.f32 %v498, -0.6931472
    %v501 = vmax.f32 %v499, -0.6931472
    %v502 = vsub.f32 -0.6931472, %v498
    %v503 = vsub.f32 -0.6931472, %v499
    %v504 = vand.u32 2147483647, %v502
    %v505 = vand.u32 2147483647, %v503
    %v506 = vsub.f32 0.0, %v504
    %v507 = vsub.f32 0.0, %v505
    %v508 = vmul.f32 %v506, 1.442695
    %v509 = vpow.pop %v508
    %v510 = vmul.f32 %v507, 1.442695
    %v511 = vpow.pop %v510
    %v512 = vadd.f32 %v509, 1.0
    %v513 = vadd.f32 %v511, 1.0
    %v514 = vlog2.pop %v512
    %v515 = vmul.f32 %v514, 0.6931472
    %v516 = vlog2.pop %v513
    %v517 = vmul.f32 %v516, 0.6931472
    %v518 = vadd.f32 %v500, %v515
    %v519 = vadd.f32 %v501, %v517
    %v520 = vadd.f32 %v416, %v518
    %v521 = vadd.f32 %v417, %v519
    %v522 = vmul.f32 %v520, 1.442695
    %v523 = vpow.pop %v522
    %v524 = vmul.f32 %v521, 1.442695
    %v525 = vpow.pop %v524
    %v526 = vld [vmem:[#allocation11] sm:$0xff]
    %v527 = vld [vmem:[#allocation11 + $0x8] sm:$0xff]
    %v528 = vld [vmem:[#allocation11 + $0x10] sm:$0xff]
    %v529 = vld [vmem:[#allocation11 + $0x18] sm:$0xff]
    %v530 = vld [vmem:[#allocation11 + $0x20] sm:$0xff]
    %v531 = vld [vmem:[#allocation11 + $0x28] sm:$0xff]
    %v532 = vld [vmem:[#allocation11 + $0x30] sm:$0xff]
    %v533 = vld [vmem:[#allocation11 + $0x38] sm:$0xff]
    %v534 = vld [vmem:[#allocation11 + $0x40] sm:$0xff]
    %v535 = vld [vmem:[#allocation11 + $0x48] sm:$0xff]
    %v536 = vld [vmem:[#allocation11 + $0x50] sm:$0xff]
    %v537 = vld [vmem:[#allocation11 + $0x58] sm:$0xff]
    %v538 = vld [vmem:[#allocation11 + $0x60] sm:$0xff]
    %v539 = vld [vmem:[#allocation11 + $0x68] sm:$0xff]
    %v540 = vld [vmem:[#allocation11 + $0x70] sm:$0xff]
    %v541 = vld [vmem:[#allocation11 + $0x78] sm:$0xff]
    %v542 = vld [vmem:[%s8] sm:$0x1]
    %v544 = vperm.slane %v542, 0
    %546 = vmatpush.msra.mxu0 %v541
    %547 = vmatpush.msra.mxu0 %v540
    %548 = vmatpush.msra.mxu0 %v539
    %549 = vmatpush.msra.mxu0 %v538
    %550 = vmatpush.msra.mxu0 %v537
    %551 = vmatpush.msra.mxu0 %v536
    %552 = vmatpush.msra.mxu0 %v535
    %553 = vmatpush.msra.mxu0 %v534
    %554 = vmatpush.msra.mxu0 %v533
    %555 = vmatpush.msra.mxu0 %v532
    %556 = vmatpush.msra.mxu0 %v531
    %557 = vmatpush.msra.mxu0 %v530
    %558 = vmatpush.msra.mxu0 %v529
    %559 = vmatpush.msra.mxu0 %v528
    %560 = vmatpush.msra.mxu0 %v527
    %561 = vmatpush.msra.mxu0 %v526
    %562 = vmatmul.f32.gmra.mxu0 %v523
    %v563 = vpop.f32.mrf.mxu0
    %v564 = vadd.f32 %v544, %v563
    %565 = vmatmul.f32.gmra.mxu0 %v525
    %v566 = vpop.f32.mrf.mxu0
    %v567 = vadd.f32 %v544, %v566
    %568 = vdwg.mxu0
    %v569 = vmax.f32 %v564, 0.0
    %v570 = vmax.f32 %v567, 0.0
    %v571 = vld [vmem:[#allocation13] sm:$0xff]
    %v572 = vld [vmem:[#allocation13 + $0x8] sm:$0xff]
    %v573 = vld [vmem:[#allocation13 + $0x10] sm:$0xff]
    %v574 = vld [vmem:[#allocation13 + $0x18] sm:$0xff]
    %v575 = vld [vmem:[#allocation13 + $0x20] sm:$0xff]
    %v576 = vld [vmem:[#allocation13 + $0x28] sm:$0xff]
    %v577 = vld [vmem:[#allocation13 + $0x30] sm:$0xff]
    %v578 = vld [vmem:[#allocation13 + $0x38] sm:$0xff]
    %v579 = vld [vmem:[#allocation13 + $0x40] sm:$0xff]
    %v580 = vld [vmem:[#allocation13 + $0x48] sm:$0xff]
    %v581 = vld [vmem:[#allocation13 + $0x50] sm:$0xff]
    %v582 = vld [vmem:[#allocation13 + $0x58] sm:$0xff]
    %v583 = vld [vmem:[#allocation13 + $0x60] sm:$0xff]
    %v584 = vld [vmem:[#allocation13 + $0x68] sm:$0xff]
    %v585 = vld [vmem:[#allocation13 + $0x70] sm:$0xff]
    %v586 = vld [vmem:[#allocation13 + $0x78] sm:$0xff]
    %v587 = vld [vmem:[%s10] sm:$0x1]
    %v589 = vperm.slane %v587, 0
    %591 = vmatpush.msra.mxu0 %v586
    %592 = vmatpush.msra.mxu0 %v585
    %593 = vmatpush.msra.mxu0 %v584
    %594 = vmatpush.msra.mxu0 %v583
    %595 = vmatpush.msra.mxu0 %v582
    %596 = vmatpush.msra.mxu0 %v581
    %597 = vmatpush.msra.mxu0 %v580
    %598 = vmatpush.msra.mxu0 %v579
    %599 = vmatpush.msra.mxu0 %v578
    %600 = vmatpush.msra.mxu0 %v577
    %601 = vmatpush.msra.mxu0 %v576
    %602 = vmatpush.msra.mxu0 %v575
    %603 = vmatpush.msra.mxu0 %v574
    %604 = vmatpush.msra.mxu0 %v573
    %605 = vmatpush.msra.mxu0 %v572
    %606 = vmatpush.msra.mxu0 %v571
    %607 = vmatmul.f32.gmra.mxu0 %v569
    %v608 = vpop.f32.mrf.mxu0
    %v609 = vadd.f32 %v589, %v608
    %610 = vmatmul.f32.gmra.mxu0 %v570
    %v611 = vpop.f32.mrf.mxu0
    %v612 = vadd.f32 %v589, %v611
    %613 = vdwg.mxu0
    %614 = vst [vmem:[#allocation15] sm:$0xff] %v523
    %615 = vst [vmem:[#allocation15 + $0x8] sm:$0xff] %v525
    %616 = vst [vmem:[#allocation14] sm:$0xff] %v609
    %617 = vst [vmem:[#allocation14 + $0x8] sm:$0xff] %v612
    // Predicated region
    $region74: #{tpu_custom_call.1} parent=1 // pred_check
      _
    $region75: #{tpu_custom_call.1} parent=1 // pred_check_branch
      %619 = sbr.rel (0) target = $region77
    $region76: #{tpu_custom_call.1} parent=1 // pred_region
      %621 = vsyncadd [#allocation4], 0
      %s622 = sshll.u32 [#allocation14], 4
      %s623 = int_to_ptr.vmem [resolvable:$true] %s622
      %s624 = sshll.u32 %s11, 4
      %s625 = int_to_ptr.hbm [resolvable:$true] %s624
      %630 = dma.vmem_to_hbm [thread:$0]  %s623, 256, %s625, [#allocation4], 128, 128, 8
    $region77: #{tpu_custom_call.1} parent=1 // pred_fallthru
      _
    // Predicated region
    $region78: #{tpu_custom_call.1} parent=1 // pred_check
      _
    $region79: #{tpu_custom_call.1} parent=1 // pred_check_branch
      %632 = sbr.rel (0) target = $region81
    $region80: #{tpu_custom_call.1} parent=1 // pred_region
      %634 = vsyncadd [#allocation16], 0
      %s635 = sshll.u32 [#allocation15], 4
      %s636 = int_to_ptr.vmem [resolvable:$true] %s635
      %s637 = sshll.u32 %s12, 4
      %s638 = int_to_ptr.hbm [resolvable:$true] %s637
      %643 = dma.vmem_to_hbm [thread:$0]  %s636, 256, %s638, [#allocation16], 128, 128, 8
    $region81: #{tpu_custom_call.1} parent=1 // pred_fallthru
      _
    // Predicated region
    $region82: #{tpu_custom_call.1} parent=1 // pred_check
      _
    $region83: #{tpu_custom_call.1} parent=1 // pred_check_branch
      %645 = sbr.rel (0) target = $region85
    $region84: #{tpu_custom_call.1} parent=1 // pred_region
      %647 = dma.done [#allocation4], 256
    $region85: #{tpu_custom_call.1} parent=1 // pred_fallthru
      _
    // Predicated region
    $region86: #{tpu_custom_call.1} parent=1 // pred_check
      _
    $region87: #{tpu_custom_call.1} parent=1 // pred_check_branch
      %649 = sbr.rel (0) target = $region89
    $region88: #{tpu_custom_call.1} parent=1 // pred_region
      %651 = dma.done [#allocation16], 256
    $region89: #{tpu_custom_call.1} parent=1 // pred_fallthru
      _
    %652 = vsyncpa [#allocation3], 1
    %653 = vsyncpa [#allocation6], 1
    %654 = vsyncpa [#allocation9], 1
    %655 = vsyncpa [#allocation12], 1
    %656 = vsyncpa [#allocation4], 1
    %657 = vsyncpa [#allocation16], 1

</llo_original>
